<compile_context>
chip_gen: v5e
topology: v5e:2x2
jax: 0.10.0
libtpu: 0.0.40
codegen_flags: <defaults>
</compile_context>

<pallas_src>
import jax
import jax.numpy as jnp
from jax.experimental import pallas as pl
from jax.experimental.pallas import tpu as pltpu

LANE = 128
SUBLANE = 8


def _make_kernel(tm, bps, valid_rows, needs_mask):
    """Build the kernel closed over static tiling constants."""

    def kernel(pred_ref, gt_ref, out_ref, acc_ref):
        j = pl.program_id(1)

        @pl.when(j == 0)
        def _init():
            acc_ref[...] = jnp.zeros_like(acc_ref)

        p = pred_ref[...].astype(jnp.float32)
        g = gt_ref[...].astype(jnp.float32)
        # cos(p)cos(g) + sin(p)sin(g) == cos(p - g); padding (p == g) -> 0.
        contrib = 1.0 - jnp.cos(p - g)

        def accum(x):
            if tm % SUBLANE == 0:
                # Full-vreg adds only; no masked sub-vreg RMW per step.
                acc_ref[...] += x.reshape(tm // SUBLANE, SUBLANE, LANE).sum(axis=0)
            else:
                # Only reachable on the single-block (full-extent) path.
                acc_ref[0:1, :] += jnp.sum(x, axis=0, keepdims=True)

        if needs_mask:
            c = pl.program_id(0)
            row_start = (c * bps + j) * tm
            is_full = row_start + tm <= valid_rows

            @pl.when(is_full)
            def _full_block():
                accum(contrib)

            @pl.when(jnp.logical_not(is_full))
            def _ragged_block():
                # Last (partial) block, or a clamped phantom block of the
                # second core split: zero out rows past the valid extent.
                ridx = jax.lax.broadcasted_iota(jnp.int32, (tm, LANE), 0) + row_start
                accum(jnp.where(ridx < valid_rows, contrib, 0.0))
        else:
            accum(contrib)

        @pl.when(j == pl.num_programs(1) - 1)
        def _finalize():
            out_ref[0] = acc_ref[...]

    return kernel


def cosine_similarity_loss(pred, gt, loss_weight=1.0, *, block_rows=8192,
                           core_parallel=False):
    """JAX/Pallas equivalent of CosineSimilarityLoss.forward.

    pred, gt: same-shape arrays (any float dtype; math in f32).
    Returns a float32 scalar: loss_weight * mean(1 - cos(pred - gt)).
    """
    assert pred.shape == gt.shape
    assert block_rows >= SUBLANE and block_rows % 32 == 0
    n_elems = pred.size
    assert n_elems > 0

    # Flatten to a lane-dense 2-D slab (ravel + reshape of contiguous data is free).
    p_flat = jnp.ravel(pred)
    g_flat = jnp.ravel(gt)

    rem = n_elems % LANE
    if rem:
        # TODO(synk): totals not divisible by 128 still pay one O(N) pad copy;
        # pad values are identical in both inputs so they contribute exactly 0.
        pad = LANE - rem
        p_flat = jnp.pad(p_flat, (0, pad))
        g_flat = jnp.pad(g_flat, (0, pad))
    rows = p_flat.size // LANE
    p2 = p_flat.reshape(rows, LANE)
    g2 = g_flat.reshape(rows, LANE)

    # ---- static tiling / core-split selection -------------------------------
    if rows <= block_rows:
        tm, num_blocks = rows, 1                       # single full-extent block
    elif rows <= 2 * block_rows:
        half = -(-rows // 2)                           # one balanced block per TC
        tm = -(-half // 32) * 32                       # 32-row align (any dtype tile)
        num_blocks = -(-rows // tm)                    # == 2
    else:
        tm = block_rows
        num_blocks = -(-rows // tm)

    num_splits = 2 if num_blocks >= 2 else 1           # unconditional 2-way split
    bps = -(-num_blocks // num_splits)                 # blocks per split
    needs_mask = (num_splits * bps * tm != rows)       # partial and/or phantom block

    if num_splits * bps > num_blocks:
        # Clamp phantom blocks of the second split onto the last real block;
        # their contribution is masked to zero in-kernel.
        in_map = lambda c, j: (jnp.minimum(c * bps + j, num_blocks - 1), 0)
    else:
        in_map = lambda c, j: (c * bps + j, 0)

    if core_parallel:
        dims = (pltpu.CORE_PARALLEL, pltpu.ARBITRARY)  # opt-in for v7x
    else:
        dims = ("parallel", "arbitrary")

    itemsize = max(jnp.dtype(pred.dtype).itemsize, jnp.dtype(gt.dtype).itemsize)
    # 2 inputs x 2 pipeline buffers x tile + headroom; >= 32 MiB to lift v5e's
    # 16 MiB scoped default, capped at v7x per-TC physical VMEM.
    vmem_limit = 2 * 2 * tm * LANE * itemsize + (8 << 20)
    vmem_limit = int(min(max(vmem_limit, 32 << 20), 64 << 20))

    cost = pl.CostEstimate(
        flops=5 * n_elems,
        transcendentals=n_elems,
        bytes_accessed=n_elems * (jnp.dtype(pred.dtype).itemsize
                                  + jnp.dtype(gt.dtype).itemsize)
        + num_splits * SUBLANE * LANE * 4,
    )

    kernel = _make_kernel(tm, bps, rows, needs_mask)

    partials = pl.pallas_call(
        kernel,
        out_shape=jax.ShapeDtypeStruct((num_splits, SUBLANE, LANE), jnp.float32),
        grid_spec=pltpu.PrefetchScalarGridSpec(
            num_scalar_prefetch=0,
            grid=(num_splits, bps),
            in_specs=[
                pl.BlockSpec((tm, LANE), in_map),
                pl.BlockSpec((tm, LANE), in_map),
            ],
            out_specs=pl.BlockSpec((1, SUBLANE, LANE), lambda c, j: (c, 0, 0)),
            scratch_shapes=[pltpu.VMEM((SUBLANE, LANE), jnp.float32)],
        ),
        compiler_params=pltpu.CompilerParams(
            dimension_semantics=dims,
            vmem_limit_bytes=vmem_limit,
        ),
        cost_estimate=cost,
    )(p2, g2)

    total = jnp.sum(partials)
    return jnp.float32(loss_weight) * total / jnp.float32(n_elems)


if __name__ == "__main__":
    key = jax.random.PRNGKey(0)
    k1, k2 = jax.random.split(key)
    B, C, H, W = 2, 4, 16, 16
    pred = jax.random.normal(k1, (B, C, H, W), dtype=jnp.float32)
    gt = jax.random.normal(k2, (B, C, H, W), dtype=jnp.float32)

    loss = cosine_similarity_loss(pred, gt, loss_weight=1.0)
    loss = jax.block_until_ready(loss)

    # pure-JAX reference (op-for-op match of the PyTorch module)
    ref = jnp.mean(1.0 - (jnp.cos(pred) * jnp.cos(gt) + jnp.sin(pred) * jnp.sin(gt)))
    assert jnp.allclose(loss, ref, rtol=1e-5, atol=1e-5), (loss, ref)

    print("KERNEL_OK")
</pallas_src>

<mosaic_0001>
module attributes {stable_mosaic.version = 11 : i64} {
  func.func @kernel(%arg0: i32, %arg1: i32, %arg2: memref<16x128xf32, #tpu.memory_space<vmem>>, %arg3: memref<16x128xf32, #tpu.memory_space<vmem>>, %arg4: memref<1x8x128xf32, #tpu.memory_space<vmem>>, %arg5: memref<8x128xf32, #tpu.memory_space<vmem>>) attributes {dimension_semantics = [#tpu.dimension_semantics<parallel>, #tpu.dimension_semantics<arbitrary>], iteration_bounds = array<i64: 1, 1>, scalar_prefetch = 0 : i64, scratch_operands = 1 : i64, tpu.core_type = #tpu.core_type<tc>, window_params = [{transform_indices = @transform_0, window_bounds = array<i64: 16, 128>}, {transform_indices = @transform_1, window_bounds = array<i64: 16, 128>}, {transform_indices = @transform_2, window_bounds = array<i64: 1, 8, 128>}]} {
    %c0_i32 = arith.constant 0 : i32
    %0 = arith.cmpi eq, %arg1, %c0_i32 : i32
    %1 = arith.extui %0 : i1 to i32
    %c0_i32_0 = arith.constant 0 : i32
    %2 = arith.cmpi ne, %1, %c0_i32_0 : i32
    scf.if %2 {
      %cst_11 = arith.constant 0.000000e+00 : f32
      %17 = vector.broadcast %cst_11 : f32 to vector<8x128xf32>
      %c0_12 = arith.constant 0 : index
      %c0_13 = arith.constant 0 : index
      %18 = vector.load %arg5[%c0_12, %c0_13] : memref<8x128xf32, #tpu.memory_space<vmem>>, vector<8x128xf32>
      tpu.vector_store %arg5[%c0_12, %c0_13], %17 {strides = array<i32>} : memref<8x128xf32, #tpu.memory_space<vmem>>, vector<8x128xf32>,
    } else {
    }
    %c0 = arith.constant 0 : index
    %c0_1 = arith.constant 0 : index
    %3 = vector.load %arg2[%c0, %c0_1] : memref<16x128xf32, #tpu.memory_space<vmem>>, vector<16x128xf32>
    %c0_2 = arith.constant 0 : index
    %c0_3 = arith.constant 0 : index
    %4 = vector.load %arg3[%c0_2, %c0_3] : memref<16x128xf32, #tpu.memory_space<vmem>>, vector<16x128xf32>
    %5 = arith.subf %3, %4 : vector<16x128xf32>
    %6 = math.cos %5 : vector<16x128xf32>
    %cst = arith.constant 1.000000e+00 : f32
    %7 = vector.broadcast %cst : f32 to vector<16x128xf32>
    %8 = arith.subf %7, %6 : vector<16x128xf32>
    %c0_4 = arith.constant 0 : index
    %c0_5 = arith.constant 0 : index
    %9 = vector.load %arg5[%c0_4, %c0_5] : memref<8x128xf32, #tpu.memory_space<vmem>>, vector<8x128xf32>
    %10 = vector.shape_cast %8 : vector<16x128xf32> to vector<2x8x128xf32>
    %cst_6 = arith.constant dense<0.000000e+00> : vector<8x128xf32>
    %11 = vector.multi_reduction <add>, %10, %cst_6 [0] : vector<2x8x128xf32> to vector<8x128xf32>
    %12 = arith.addf %9, %11 : vector<8x128xf32>
    %c0_7 = arith.constant 0 : index
    %c0_8 = arith.constant 0 : index
    %13 = vector.load %arg5[%c0_7, %c0_8] : memref<8x128xf32, #tpu.memory_space<vmem>>, vector<8x128xf32>
    tpu.vector_store %arg5[%c0_7, %c0_8], %12 {strides = array<i32>} : memref<8x128xf32, #tpu.memory_space<vmem>>, vector<8x128xf32>,
    %c0_i32_9 = arith.constant 0 : i32
    %14 = arith.cmpi eq, %arg1, %c0_i32_9 : i32
    %15 = arith.extui %14 : i1 to i32
    %c0_i32_10 = arith.constant 0 : i32
    %16 = arith.cmpi ne, %15, %c0_i32_10 : i32
    scf.if %16 {
      %c0_11 = arith.constant 0 : index
      %c0_12 = arith.constant 0 : index
      %17 = vector.load %arg5[%c0_11, %c0_12] : memref<8x128xf32, #tpu.memory_space<vmem>>, vector<8x128xf32>
      %c0_13 = arith.constant 0 : index
      %c0_14 = arith.constant 0 : index
      %c0_15 = arith.constant 0 : index
      %18 = vector.load %arg4[%c0_13, %c0_14, %c0_15] : memref<1x8x128xf32, #tpu.memory_space<vmem>>, vector<1x8x128xf32>
      %19 = vector.shape_cast %18 : vector<1x8x128xf32> to vector<8x128xf32>
      %20 = vector.shape_cast %17 : vector<8x128xf32> to vector<1x8x128xf32>
      tpu.vector_store %arg4[%c0_13, %c0_14, %c0_15], %20 {strides = array<i32>} : memref<1x8x128xf32, #tpu.memory_space<vmem>>, vector<1x8x128xf32>,
    } else {
    }
    return
  }
  func.func @transform_0(%arg0: i32, %arg1: i32) -> (i32, i32) {
    %c1_i32 = arith.constant 1 : i32
    %0 = arith.muli %arg0, %c1_i32 : i32
    %1 = arith.addi %0, %arg1 : i32
    %c0_i32 = arith.constant 0 : i32
    %c0_i32_0 = arith.constant 0 : i32
    return %1, %c0_i32 : i32, i32
  }
  func.func @transform_1(%arg0: i32, %arg1: i32) -> (i32, i32) {
    %c1_i32 = arith.constant 1 : i32
    %0 = arith.muli %arg0, %c1_i32 : i32
    %1 = arith.addi %0, %arg1 : i32
    %c0_i32 = arith.constant 0 : i32
    %c0_i32_0 = arith.constant 0 : i32
    return %1, %c0_i32 : i32, i32
  }
  func.func @transform_2(%arg0: i32, %arg1: i32) -> (i32, i32, i32) {
    %c0_i32 = arith.constant 0 : i32
    %c0_i32_0 = arith.constant 0 : i32
    %c0_i32_1 = arith.constant 0 : i32
    return %arg0, %c0_i32, %c0_i32_0 : i32, i32, i32
  }
}

</mosaic_0001>

<llo_original>
// kernel: tpu_custom_call.1
$region0: #{tpu_custom_call.1}
  #allocation0 [shape = 'u32[]', space=smem, size = 0x4, offset = 0x4, fixed_abs, tag = 'smem constant byte address 0x4 - core index']
  #allocation1 [shape = 'u32[72,128]{1,0:T(1,128)}', space=vmem, size = 0x9000, scoped, tag = 'internal scratch']
  #allocation2 [shape = 'f32[8,128]{1,0:T(8,128)}', space=vmem, size = 0x1000, scoped, tag = 'scratch operand']
  %s0 = inlined_call_operand.hbm [shape: f32[16,128], index: 0, kind: input, shape index: {}]
  %s1 = inlined_call_operand.hbm [shape: f32[16,128], index: 1, kind: input, shape index: {}]
  %s2 = inlined_call_operand.hbm [shape: f32[1,8,128], index: 2, kind: output, shape index: {}]
  %s3 = sld [smem:[#allocation0]]
  $region34: #{tpu_custom_call.1} parent=0
    _
  %s5 = ssub.s32 1, %s3
  %s6 = scalar_select 0, %s5, %s3
  $region1: #{tpu_custom_call.1} parent=0
    #allocation3 [shape = 'u8[8192]{0}', space=vmem, size = 0x2000, scoped, tag = 'input window, operand 0, single buffered']
    #allocation4 [shape = 's32[1]{0}', space=sflag, size = 0x4, scoped, tag = 'scoped memory for tpu_custom_call.1']
    #allocation5 [shape = 's32[1]{0}', space=sflag, size = 0x4, scoped, tag = 'scoped memory for tpu_custom_call.1']
    #allocation6 [shape = 'u8[8192]{0}', space=vmem, size = 0x2000, scoped, tag = 'input window, operand 1, single buffered']
    #allocation7 [shape = 's32[1]{0}', space=sflag, size = 0x4, scoped, tag = 'scoped memory for tpu_custom_call.1']
    #allocation8 [shape = 'u8[4096]{0}', space=vmem, size = 0x1000, scoped, tag = 'output window, operand 0, single buffered']
    %7 = vsyncpa [#allocation4], 0
    %8 = vsyncpa [#allocation7], 0
    %9 = vsyncpa [#allocation5], 0
    // Predicated region
    $region2: #{tpu_custom_call.1} parent=1 // pred_check
      _
    $region3: #{tpu_custom_call.1} parent=1 // pred_check_branch
      %11 = sbr.rel (0) target = $region5
    $region4: #{tpu_custom_call.1} parent=1 // pred_region
      %s12 = sadd.s32 0, 0
      %s13 = smul.u32 2, %s12
      %15 = vsyncadd [#allocation4], 0
      %s16 = smul.addr %s13, 8
      %s17 = scalar_lea.hbm %s0, %s16
      %s18 = sshll.u32 %s17, 4
      %s19 = int_to_ptr.hbm [resolvable:$true] %s18
      %s20 = sshll.u32 [#allocation3], 4
      %s21 = int_to_ptr.vmem [resolvable:$true] %s20
      %26 = dma.hbm_to_vmem [thread:$0]  %s19, 256, %s21, [#allocation4], 128, 128, 8
    $region5: #{tpu_custom_call.1} parent=1 // pred_fallthru
      _
    // Predicated region
    $region6: #{tpu_custom_call.1} parent=1 // pred_check
      _
    $region7: #{tpu_custom_call.1} parent=1 // pred_check_branch
      %28 = sbr.rel (0) target = $region9
    $region8: #{tpu_custom_call.1} parent=1 // pred_region
      %s29 = sadd.s32 0, 0
      %s30 = smul.u32 2, %s29
      %32 = vsyncadd [#allocation7], 0
      %s33 = smul.addr %s30, 8
      %s34 = scalar_lea.hbm %s1, %s33
      %s35 = sshll.u32 %s34, 4
      %s36 = int_to_ptr.hbm [resolvable:$true] %s35
      %s37 = sshll.u32 [#allocation6], 4
      %s38 = int_to_ptr.vmem [resolvable:$true] %s37
      %43 = dma.hbm_to_vmem [thread:$0]  %s36, 256, %s38, [#allocation7], 128, 128, 8
    $region9: #{tpu_custom_call.1} parent=1 // pred_fallthru
      _
    // Predicated region
    $region10: #{tpu_custom_call.1} parent=1 // pred_check
      _
    $region11: #{tpu_custom_call.1} parent=1 // pred_check_branch
      %45 = sbr.rel (0) target = $region13
    $region12: #{tpu_custom_call.1} parent=1 // pred_region
      %47 = dma.done [#allocation4], 256
    $region13: #{tpu_custom_call.1} parent=1 // pred_fallthru
      _
    // Predicated region
    $region14: #{tpu_custom_call.1} parent=1 // pred_check
      _
    $region15: #{tpu_custom_call.1} parent=1 // pred_check_branch
      %49 = sbr.rel (0) target = $region17
    $region16: #{tpu_custom_call.1} parent=1 // pred_region
      %51 = dma.done [#allocation7], 256
    $region17: #{tpu_custom_call.1} parent=1 // pred_fallthru
      _
    %s52 = sadd.s32 0, 0
    %s53 = smul.u32 2, %s52
    %s54 = sadd.s32 0, 0
    %s55 = smul.u32 2, %s54
    %p56 = scmp.eq.s32.totalorder 0, 0
    // Predicated region
    $region18: #{tpu_custom_call.1} parent=1 // pred_check
      %p57 = pneg %p56
    $region19: #{tpu_custom_call.1} parent=1 // pred_check_branch
      %59 = sbr.rel (%p57) target = $region21
    $region20: #{tpu_custom_call.1} parent=1 // pred_region
      %60 = vst [vmem:[#allocation2] sm:$0xff] 0.0
    $region21: #{tpu_custom_call.1} parent=1 // pred_fallthru
      _
    %v61 = vld [vmem:[#allocation3] sm:$0xff]
    %v62 = vld [vmem:[#allocation3 + $0x8] sm:$0xff]
    %v63 = vld [vmem:[#allocation6] sm:$0xff]
    %v64 = vld [vmem:[#allocation6 + $0x8] sm:$0xff]
    %v65 = vsub.f32 %v61, %v63
    %v66 = vsub.f32 %v62, %v64
    %v67 = vand.u32 2147483647, %v65
    %vm68 = vcmp.le.f32.partialorder %v67, 0.7853982
    %vm69 = vcmp.lt.s32.totalorder %v65, 0
    %v70 = vand.u32 %v65, 2139095040
    %v71 = vshrl.u32 %v70, 23
    %v72 = vsub.s32 %v71, 127
    %v73 = vand.u32 2147483647, %v65
    %v74 = vand.u32 %v73, 8388607
    %v75 = vor.u32 %v74, 8388608
    %v76 = vsub.s32 0, %v75
    %v77 = vadd.s32 %v72, 1
    %vm78 = vcmp.gt.s32.totalorder %v77, 0
    %v79 = vsel %vm78, %v77, 0
    %v80 = vshrl.u32 %v79, 5
    %v81 = vand.u32 %v79, 31
    %v82 = vsub.s32 32, %v81
    %v83 = vshrl.u32 683565275, %v82
    %v84 = vshll.u32 683565275, %v81
    %v85 = vshrl.u32 2475754826, %v82
    %v86 = vor.u32 %v84, %v85
    %v87 = vshll.u32 2475754826, %v81
    %v88 = vshrl.u32 2131351028, %v82
    %v89 = vor.u32 %v87, %v88
    %v90 = vshll.u32 2131351028, %v81
    %v91 = vshrl.u32 2102212464, %v82
    %v92 = vor.u32 %v90, %v91
    %v93 = vshll.u32 2102212464, %v81
    %v94 = vshrl.u32 920167782, %v82
    %v95 = vor.u32 %v93, %v94
    %v96 = vshll.u32 920167782, %v81
    %v97 = vshrl.u32 1326507024, %v82
    %v98 = vor.u32 %v96, %v97
    %vm99 = vcmp.lt.s32.totalorder %v80, 1
    %vm100 = vcmp.lt.s32.totalorder %v80, 2
    %vm101 = vcmp.lt.s32.totalorder %v80, 3
    %vm102 = vcmp.lt.s32.totalorder %v80, 4
    %v103 = vsel %vm99, %v83, %v86
    %v104 = vsel %vm102, %v92, 2102212464
    %v105 = vsel %vm101, %v89, %v104
    %v106 = vsel %vm100, %v103, %v105
    %v107 = vsel %vm99, %v86, %v89
    %v108 = vsel %vm102, %v95, 920167782
    %v109 = vsel %vm101, %v92, %v108
    %v110 = vsel %vm100, %v107, %v109
    %v111 = vsel %vm99, %v89, %v92
    %v112 = vsel %vm102, %v98, 1326507024
    %v113 = vsel %vm101, %v95, %v112
    %v114 = vsel %vm100, %v111, %v113
    %v115 = vshll.u32 %v75, 8
    %v116 = vand.u32 %v115, 65535
    %v117 = vshrl.u32 %v115, 16
    %v118 = vand.u32 %v114, 65535
    %v119 = vshrl.u32 %v114, 16
    %v120 = vmul.u32 %v116, %v118
    %v121 = vmul.u32 %v116, %v119
    %v122 = vmul.u32 %v117, %v118
    %v123 = vmul.u32 %v117, %v119
    %v124 = vshll.u32 %v121, 16
    %v125 = vshrl.u32 %v121, 16
    %v126 = vshll.u32 %v122, 16
    %v127 = vshrl.u32 %v122, 16
    %vm128 = vc.u32 %v120, %v124
    %v129 = vsel %vm128, 1, 0
    %v130 = vadd.s32 %v120, %v124
    %v131 = vadd.s32 %v123, %v129
    %vm132 = vc.u32 %v130, %v126
    %v133 = vsel %vm132, 1, 0
    %v134 = vadd.s32 %v130, %v126
    %v135 = vadd.s32 %v131, %v133
    %v136 = vadd.s32 %v135, %v125
    %v137 = vadd.s32 %v136, %v127
    %v138 = vand.u32 %v115, 65535
    %v139 = vshrl.u32 %v115, 16
    %v140 = vand.u32 %v110, 65535
    %v141 = vshrl.u32 %v110, 16
    %v142 = vmul.u32 %v138, %v140
    %v143 = vmul.u32 %v138, %v141
    %v144 = vmul.u32 %v139, %v140
    %v145 = vmul.u32 %v139, %v141
    %v146 = vshll.u32 %v143, 16
    %v147 = vshrl.u32 %v143, 16
    %v148 = vshll.u32 %v144, 16
    %v149 = vshrl.u32 %v144, 16
    %vm150 = vc.u32 %v142, %v146
    %v151 = vsel %vm150, 1, 0
    %v152 = vadd.s32 %v142, %v146
    %v153 = vadd.s32 %v145, %v151
    %vm154 = vc.u32 %v152, %v148
    %v155 = vsel %vm154, 1, 0
    %v156 = vadd.s32 %v152, %v148
    %v157 = vadd.s32 %v153, %v155
    %v158 = vadd.s32 %v157, %v147
    %v159 = vadd.s32 %v158, %v149
    %v160 = vmul.u32 %v115, %v106
    %v161 = vadd.s32 %v137, %v156
    %vm162 = vc.u32 %v137, %v156
    %v163 = vadd.s32 %v159, 1
    %v164 = vsel %vm162, %v163, %v159
    %v165 = vadd.s32 %v160, %v164
    %v166 = vadd.s32 %v165, 536870912
    %v167 = vshrl.u32 %v166, 30
    %v168 = vshll.u32 %v167, 30
    %v169 = vsub.s32 %v165, %v168
    %vm170 = vcmp.lt.s32.totalorder %v169, 0
    %v171 = vsub.s32 0, %v169
    %v172 = vsel %vm170, %v171, %v169
    %v173 = vclz %v172
    %v174 = vsub.s32 %v173, 2
    %vm175 = vcmp.gt.s32.totalorder 0, %v174
    %v176 = vsel %vm175, 0, %v174
    %v177 = vsub.s32 32, %v176
    %v178 = vshll.u32 %v169, %v176
    %v179 = vshrl.u32 %v161, %v177
    %v180 = vor.u32 %v178, %v179
    %v181 = vsub.s32 4294967266, %v176
    %v182 = vadd.s32 %v181, 127
    %v183 = vshll.u32 %v182, 23
    %v184 = vor.u32 4788187, %v183
    %v185 = vand.u32 2147483647, %v184
    %v187 = vcvt.s32.f32 %v180
    %v188 = vmul.f32 %v187, %v185
    %v189 = vxor.u32 %v188, 2147483648
    %v190 = vsel %vm69, %v189, %v188
    %v191 = vsub.s32 4, %v167
    %v192 = vsel %vm69, %v191, %v167
    %v193 = vsel %vm68, %v65, %v190
    %v194 = vsel %vm68, 0, %v192
    %v195 = vmul.f32 %v193, %v193
    %v196 = vmul.f32 %v195, -0.001358992
    %v197 = vadd.f32 %v196, 0.041655596
    %v198 = vmul.f32 %v195, %v197
    %v199 = vadd.f32 %v198, -0.4999988
    %v200 = vmul.f32 %v195, %v199
    %v201 = vadd.f32 1.0, %v200
    %v202 = vmul.f32 %v193, %v193
    %v203 = vmul.f32 %v202, -0.00019511016
    %v204 = vadd.f32 %v203, 0.008332121
    %v205 = vmul.f32 %v202, %v204
    %v206 = vadd.f32 %v205, -0.16666654
    %v207 = vmul.f32 %v202, %v206
    %v208 = vadd.f32 %v207, 1.0
    %v209 = vmul.f32 %v208, %v193
    %vm210 = vweird.f32 %v65
    %v211 = vand.u32 %v194, 3
    %vm212 = vcmp.lt.s32.totalorder %v211, 2
    %vm213 = vcmp.eq.s32.totalorder %v211, 0
    %v214 = vxor.u32 %v209, 2147483648
    %v215 = vsel %vm213, %v201, %v214
    %vm216 = vcmp.eq.s32.totalorder %v211, 2
    %v217 = vxor.u32 %v201, 2147483648
    %v218 = vsel %vm216, %v217, %v209
    %v219 = vsel %vm212, %v215, %v218
    %v220 = vsel %vm210, nan, %v219
    %v221 = vand.u32 2147483647, %v66
    %vm222 = vcmp.le.f32.partialorder %v221, 0.7853982
    %vm223 = vcmp.lt.s32.totalorder %v66, 0
    %v224 = vand.u32 %v66, 2139095040
    %v225 = vshrl.u32 %v224, 23
    %v226 = vsub.s32 %v225, 127
    %v227 = vand.u32 2147483647, %v66
    %v228 = vand.u32 %v227, 8388607
    %v229 = vor.u32 %v228, 8388608
    %v230 = vsub.s32 0, %v229
    %v231 = vadd.s32 %v226, 1
    %vm232 = vcmp.gt.s32.totalorder %v231, 0
    %v233 = vsel %vm232, %v231, 0
    %v234 = vshrl.u32 %v233, 5
    %v235 = vand.u32 %v233, 31
    %v236 = vsub.s32 32, %v235
    %v237 = vshrl.u32 683565275, %v236
    %v238 = vshll.u32 683565275, %v235
    %v239 = vshrl.u32 2475754826, %v236
    %v240 = vor.u32 %v238, %v239
    %v241 = vshll.u32 2475754826, %v235
    %v242 = vshrl.u32 2131351028, %v236
    %v243 = vor.u32 %v241, %v242
    %v244 = vshll.u32 2131351028, %v235
    %v245 = vshrl.u32 2102212464, %v236
    %v246 = vor.u32 %v244, %v245
    %v247 = vshll.u32 2102212464, %v235
    %v248 = vshrl.u32 920167782, %v236
    %v249 = vor.u32 %v247, %v248
    %v250 = vshll.u32 920167782, %v235
    %v251 = vshrl.u32 1326507024, %v236
    %v252 = vor.u32 %v250, %v251
    %vm253 = vcmp.lt.s32.totalorder %v234, 1
    %vm254 = vcmp.lt.s32.totalorder %v234, 2
    %vm255 = vcmp.lt.s32.totalorder %v234, 3
    %vm256 = vcmp.lt.s32.totalorder %v234, 4
    %v257 = vsel %vm253, %v237, %v240
    %v258 = vsel %vm256, %v246, 2102212464
    %v259 = vsel %vm255, %v243, %v258
    %v260 = vsel %vm254, %v257, %v259
    %v261 = vsel %vm253, %v240, %v243
    %v262 = vsel %vm256, %v249, 920167782
    %v263 = vsel %vm255, %v246, %v262
    %v264 = vsel %vm254, %v261, %v263
    %v265 = vsel %vm253, %v243, %v246
    %v266 = vsel %vm256, %v252, 1326507024
    %v267 = vsel %vm255, %v249, %v266
    %v268 = vsel %vm254, %v265, %v267
    %v269 = vshll.u32 %v229, 8
    %v270 = vand.u32 %v269, 65535
    %v271 = vshrl.u32 %v269, 16
    %v272 = vand.u32 %v268, 65535
    %v273 = vshrl.u32 %v268, 16
    %v274 = vmul.u32 %v270, %v272
    %v275 = vmul.u32 %v270, %v273
    %v276 = vmul.u32 %v271, %v272
    %v277 = vmul.u32 %v271, %v273
    %v278 = vshll.u32 %v275, 16
    %v279 = vshrl.u32 %v275, 16
    %v280 = vshll.u32 %v276, 16
    %v281 = vshrl.u32 %v276, 16
    %vm282 = vc.u32 %v274, %v278
    %v283 = vsel %vm282, 1, 0
    %v284 = vadd.s32 %v274, %v278
    %v285 = vadd.s32 %v277, %v283
    %vm286 = vc.u32 %v284, %v280
    %v287 = vsel %vm286, 1, 0
    %v288 = vadd.s32 %v284, %v280
    %v289 = vadd.s32 %v285, %v287
    %v290 = vadd.s32 %v289, %v279
    %v291 = vadd.s32 %v290, %v281
    %v292 = vand.u32 %v269, 65535
    %v293 = vshrl.u32 %v269, 16
    %v294 = vand.u32 %v264, 65535
    %v295 = vshrl.u32 %v264, 16
    %v296 = vmul.u32 %v292, %v294
    %v297 = vmul.u32 %v292, %v295
    %v298 = vmul.u32 %v293, %v294
    %v299 = vmul.u32 %v293, %v295
    %v300 = vshll.u32 %v297, 16
    %v301 = vshrl.u32 %v297, 16
    %v302 = vshll.u32 %v298, 16
    %v303 = vshrl.u32 %v298, 16
    %vm304 = vc.u32 %v296, %v300
    %v305 = vsel %vm304, 1, 0
    %v306 = vadd.s32 %v296, %v300
    %v307 = vadd.s32 %v299, %v305
    %vm308 = vc.u32 %v306, %v302
    %v309 = vsel %vm308, 1, 0
    %v310 = vadd.s32 %v306, %v302
    %v311 = vadd.s32 %v307, %v309
    %v312 = vadd.s32 %v311, %v301
    %v313 = vadd.s32 %v312, %v303
    %v314 = vmul.u32 %v269, %v260
    %v315 = vadd.s32 %v291, %v310
    %vm316 = vc.u32 %v291, %v310
    %v317 = vadd.s32 %v313, 1
    %v318 = vsel %vm316, %v317, %v313
    %v319 = vadd.s32 %v314, %v318
    %v320 = vadd.s32 %v319, 536870912
    %v321 = vshrl.u32 %v320, 30
    %v322 = vshll.u32 %v321, 30
    %v323 = vsub.s32 %v319, %v322
    %vm324 = vcmp.lt.s32.totalorder %v323, 0
    %v325 = vsub.s32 0, %v323
    %v326 = vsel %vm324, %v325, %v323
    %v327 = vclz %v326
    %v328 = vsub.s32 %v327, 2
    %vm329 = vcmp.gt.s32.totalorder 0, %v328
    %v330 = vsel %vm329, 0, %v328
    %v331 = vsub.s32 32, %v330
    %v332 = vshll.u32 %v323, %v330
    %v333 = vshrl.u32 %v315, %v331
    %v334 = vor.u32 %v332, %v333
    %v335 = vsub.s32 4294967266, %v330
    %v336 = vadd.s32 %v335, 127
    %v337 = vshll.u32 %v336, 23
    %v338 = vor.u32 4788187, %v337
    %v339 = vand.u32 2147483647, %v338
    %v341 = vcvt.s32.f32 %v334
    %v342 = vmul.f32 %v341, %v339
    %v343 = vxor.u32 %v342, 2147483648
    %v344 = vsel %vm223, %v343, %v342
    %v345 = vsub.s32 4, %v321
    %v346 = vsel %vm223, %v345, %v321
    %v347 = vsel %vm222, %v66, %v344
    %v348 = vsel %vm222, 0, %v346
    %v349 = vmul.f32 %v347, %v347
    %v350 = vmul.f32 %v349, -0.001358992
    %v351 = vadd.f32 %v350, 0.041655596
    %v352 = vmul.f32 %v349, %v351
    %v353 = vadd.f32 %v352, -0.4999988
    %v354 = vmul.f32 %v349, %v353
    %v355 = vadd.f32 1.0, %v354
    %v356 = vmul.f32 %v347, %v347
    %v357 = vmul.f32 %v356, -0.00019511016
    %v358 = vadd.f32 %v357, 0.008332121
    %v359 = vmul.f32 %v356, %v358
    %v360 = vadd.f32 %v359, -0.16666654
    %v361 = vmul.f32 %v356, %v360
    %v362 = vadd.f32 %v361, 1.0
    %v363 = vmul.f32 %v362, %v347
    %vm364 = vweird.f32 %v66
    %v365 = vand.u32 %v348, 3
    %vm366 = vcmp.lt.s32.totalorder %v365, 2
    %vm367 = vcmp.eq.s32.totalorder %v365, 0
    %v368 = vxor.u32 %v363, 2147483648
    %v369 = vsel %vm367, %v355, %v368
    %vm370 = vcmp.eq.s32.totalorder %v365, 2
    %v371 = vxor.u32 %v355, 2147483648
    %v372 = vsel %vm370, %v371, %v363
    %v373 = vsel %vm366, %v369, %v372
    %v374 = vsel %vm364, nan, %v373
    %v375 = vsub.f32 1.0, %v220
    %v376 = vsub.f32 1.0, %v374
    %v377 = vld [vmem:[#allocation2] sm:$0xff]
    %v378 = vadd.f32 %v375, %v376
    %v379 = vadd.f32 %v377, %v378
    %380 = vst [vmem:[#allocation2] sm:$0xff] %v379
    // Predicated region
    $region22: #{tpu_custom_call.1} parent=1 // pred_check
      %p381 = pneg %p56
    $region23: #{tpu_custom_call.1} parent=1 // pred_check_branch
      %383 = sbr.rel (%p381) target = $region25
    $region24: #{tpu_custom_call.1} parent=1 // pred_region
      %v384 = vld [vmem:[#allocation2] sm:$0xff]
      %385 = vst [vmem:[#allocation8] sm:$0xff] %v384
    $region25: #{tpu_custom_call.1} parent=1 // pred_fallthru
      _
    // Predicated region
    $region26: #{tpu_custom_call.1} parent=1 // pred_check
      _
    $region27: #{tpu_custom_call.1} parent=1 // pred_check_branch
      %387 = sbr.rel (0) target = $region29
    $region28: #{tpu_custom_call.1} parent=1 // pred_region
      %389 = vsyncadd [#allocation5], 0
      %s391 = sshll.u32 [#allocation8], 4
      %s392 = int_to_ptr.vmem [resolvable:$true] %s391
      %s393 = sshll.u32 %s2, 4
      %s394 = int_to_ptr.hbm [resolvable:$true] %s393
      %396 = dma.vmem_to_hbm [thread:$0]  %s392, 128, %s394, [#allocation5]
    $region29: #{tpu_custom_call.1} parent=1 // pred_fallthru
      _
    // Predicated region
    $region30: #{tpu_custom_call.1} parent=1 // pred_check
      _
    $region31: #{tpu_custom_call.1} parent=1 // pred_check_branch
      %398 = sbr.rel (0) target = $region33
    $region32: #{tpu_custom_call.1} parent=1 // pred_region
      %400 = dma.done [#allocation5], 128
    $region33: #{tpu_custom_call.1} parent=1 // pred_fallthru
      _
    %401 = vsyncpa [#allocation4], 1
    %402 = vsyncpa [#allocation7], 1
    %403 = vsyncpa [#allocation5], 1

</llo_original>
